<compile_context>
chip_gen: v6e
topology: v6e:2x2x1
jax: 0.10.0
libtpu: 0.0.40
codegen_flags: <defaults>
</compile_context>

<pallas_src>
import functools

import jax
import jax.numpy as jnp
from jax.experimental import pallas as pl
from jax.experimental.pallas import tpu as pltpu


def _round_up(x: int, m: int) -> int:
    return ((x + m - 1) // m) * m


def mlp_kernel(x_ref, w1_ref, b1_ref, w2_ref, b2_ref, o_ref):
    # Hidden layer: Linear + bias + ReLU.  MXU matmul, f32 accumulation;
    # bias-add / ReLU stay f32 (b1 is (1, H_pad) and broadcasts).
    h = jnp.dot(x_ref[...], w1_ref[...], preferred_element_type=jnp.float32)
    h = jnp.maximum(h + b1_ref[...], 0.0)
    # Output layer: Linear + bias (raw logits).  h stays f32 (no downcast);
    # w2 promoted to f32 for the second matmul, f32 accumulation.
    out = jnp.dot(h, w2_ref[...].astype(jnp.float32),
                  preferred_element_type=jnp.float32)
    out = out + b2_ref[...]
    # Store only the real output columns; o_ref block is (TB, F_out), so the
    # HBM write stream is F_out lanes wide, not a 128-wide padded slab.
    f_out = o_ref.shape[-1]
    o_ref[...] = out[:, :f_out].astype(o_ref.dtype)


def prepare_params(w1, b1, w2, b2, compute_dtype=jnp.bfloat16):
    """One-time parameter prep (call at load time, NOT per forward call).

    Takes torch.nn.Linear-layout parameters:
      w1: (H, F_in), b1: (H,), w2: (F_out, H), b2: (F_out,)
    Returns ((w1_p, b1_p, w2_p, b2_p), F_out): weights transposed for x @ W,
    hidden/output feature dims zero-padded to multiples of 128 (lane-dense
    VMEM layout; semantics-preserving since ReLU(0)=0 and padded w2 rows/cols
    contribute 0), w1/w2 cast to compute_dtype, biases kept float32.
    """
    H, F_in = w1.shape
    F_out = w2.shape[0]
    H_pad = _round_up(H, 128)
    F_out_pad = _round_up(F_out, 128)

    w1_p = jnp.pad(w1.T.astype(compute_dtype), ((0, 0), (0, H_pad - H)))
    b1_p = jnp.pad(b1.astype(jnp.float32).reshape(1, H),
                   ((0, 0), (0, H_pad - H)))
    w2_p = jnp.pad(w2.T.astype(compute_dtype),
                   ((0, H_pad - H), (0, F_out_pad - F_out)))
    b2_p = jnp.pad(b2.astype(jnp.float32).reshape(1, F_out),
                   ((0, 0), (0, F_out_pad - F_out)))
    return (w1_p, b1_p, w2_p, b2_p), F_out


@functools.partial(
    jax.jit, static_argnames=("out_features", "block_batch", "num_cores"))
def fully_connected_forward(x, w1_p, b1_p, w2_p, b2_p, *, out_features,
                            block_batch=512, num_cores=2):
    """Forward pass of FullyConnected (Linear -> ReLU -> Linear) -> f32 logits.

    x: (B, F_in); padded params come from prepare_params().
    """
    B, F_in = x.shape
    H_pad = w1_p.shape[1]
    F_out_pad = w2_p.shape[1]
    compute_dtype = w1_p.dtype
    x = x.astype(compute_dtype)          # no-op if the caller already casts

    # Batch tile: large (amortize ~0.35us/step overhead), but capped so the
    # grid has >= 2*num_cores steps and both v7x TensorCores get work.
    TB = min(block_batch, _round_up(pl.cdiv(B, 2 * num_cores), 8))
    grid = pl.cdiv(B, TB)                # ragged last tile handled by Pallas

    return pl.pallas_call(
        mlp_kernel,
        out_shape=jax.ShapeDtypeStruct((B, out_features), jnp.float32),
        grid_spec=pl.GridSpec(
            grid=(grid,),
            in_specs=[
                # Activations: tiled along batch, double-buffered by Pallas.
                pl.BlockSpec((TB, F_in), lambda i: (i, 0)),
                # Weights / biases: constant block index -> fetched once and
                # kept VMEM-resident for the whole grid.
                pl.BlockSpec((F_in, H_pad), lambda i: (0, 0)),
                pl.BlockSpec((1, H_pad), lambda i: (0, 0)),
                pl.BlockSpec((H_pad, F_out_pad), lambda i: (0, 0)),
                pl.BlockSpec((1, F_out_pad), lambda i: (0, 0)),
            ],
            # Unpadded output block: HBM write is (TB, F_out), not (TB, 128).
            out_specs=pl.BlockSpec((TB, out_features), lambda i: (i, 0)),
        ),
        compiler_params=pltpu.CompilerParams(
            # Batch tiles are independent -> shard across TCs (v7x megacore).
            dimension_semantics=("parallel",)),
    )(x, w1_p, b1_p, w2_p, b2_p)


if __name__ == "__main__":
    # Shapes consistent with FullyConnected(in_feature_count=32,
    # out_feature_count=4, hidden_layer=(100,)) at the default batch_size=100.
    B, F_IN, H, F_OUT = 100, 32, 100, 4

    key = jax.random.PRNGKey(0)
    kx, k1, k2, k3, k4 = jax.random.split(key, 5)

    x = jax.random.normal(kx, (B, F_IN), dtype=jnp.float32)
    # Parameters in torch.nn.Linear layout: weight (out, in), bias (out,).
    w1 = jax.random.normal(k1, (H, F_IN), dtype=jnp.float32) * 0.1
    b1 = jax.random.normal(k2, (H,), dtype=jnp.float32) * 0.1
    w2 = jax.random.normal(k3, (F_OUT, H), dtype=jnp.float32) * 0.1
    b2 = jax.random.normal(k4, (F_OUT,), dtype=jnp.float32) * 0.1

    # TODO(synk): fit()/training loop, optimizer, LR scheduler, predict_proba
    # host plumbing, and Dropout (inactive at dropout_position=None) are not
    # part of the forward kernel.

    # Pure-JAX reference of the forward semantics (f32).
    ref = jnp.maximum(x @ w1.T + b1[None, :], 0.0) @ w2.T + b2[None, :]

    # Float32 path: exact module semantics.
    params_f32, f_out = prepare_params(w1, b1, w2, b2, compute_dtype=jnp.float32)
    out_f32 = jax.block_until_ready(
        fully_connected_forward(x, *params_f32, out_features=f_out))
    assert out_f32.shape == (B, F_OUT)
    assert jnp.allclose(out_f32, ref, atol=1e-4, rtol=1e-4)

    # bfloat16 fast path (halves HBM bytes on x / weight streams, f32 accum).
    params_bf16, _ = prepare_params(w1, b1, w2, b2, compute_dtype=jnp.bfloat16)
    out_bf16 = jax.block_until_ready(
        fully_connected_forward(x, *params_bf16, out_features=f_out))
    assert out_bf16.shape == (B, F_OUT)
    assert jnp.allclose(out_bf16, ref, atol=1e-1, rtol=1e-1)

    print("KERNEL_OK")
</pallas_src>

<mosaic_0001>
module attributes {stable_mosaic.version = 11 : i64} {
  func.func @mlp_kernel(%arg0: i32, %arg1: memref<32x32xf32, #tpu.memory_space<vmem>>, %arg2: memref<32x128xf32, #tpu.memory_space<vmem>>, %arg3: memref<1x128xf32, #tpu.memory_space<vmem>>, %arg4: memref<128x128xf32, #tpu.memory_space<vmem>>, %arg5: memref<1x128xf32, #tpu.memory_space<vmem>>, %arg6: memref<32x4xf32, #tpu.memory_space<vmem>>) attributes {dimension_semantics = [#tpu.dimension_semantics<parallel>], iteration_bounds = array<i64: 4>, scalar_prefetch = 0 : i64, scratch_operands = 0 : i64, tpu.core_type = #tpu.core_type<tc>, window_params = [{transform_indices = @transform_0, window_bounds = array<i64: 32, 32>}, {pipeline_mode = #tpu.pipeline_mode<synchronous>, transform_indices = @transform_1, window_bounds = array<i64: 32, 128>}, {pipeline_mode = #tpu.pipeline_mode<synchronous>, transform_indices = @transform_2, window_bounds = array<i64: 1, 128>}, {pipeline_mode = #tpu.pipeline_mode<synchronous>, transform_indices = @transform_3, window_bounds = array<i64: 128, 128>}, {pipeline_mode = #tpu.pipeline_mode<synchronous>, transform_indices = @transform_4, window_bounds = array<i64: 1, 128>}, {transform_indices = @transform_5, window_bounds = array<i64: 32, 4>}]} {
    %c0 = arith.constant 0 : index
    %c0_0 = arith.constant 0 : index
    %0 = vector.load %arg1[%c0, %c0_0] : memref<32x32xf32, #tpu.memory_space<vmem>>, vector<32x32xf32>
    %c0_1 = arith.constant 0 : index
    %c0_2 = arith.constant 0 : index
    %1 = vector.load %arg2[%c0_1, %c0_2] : memref<32x128xf32, #tpu.memory_space<vmem>>, vector<32x128xf32>
    %cst = arith.constant dense<0.000000e+00> : vector<32x128xf32>
    %2 = tpu.matmul %0, %1, %cst {dimension_numbers = #tpu.dot_dimension_numbers<[1], [0], [0], [1], [0, 0, 1, 1], [], []>} : vector<32x32xf32>, vector<32x128xf32>, vector<32x128xf32> -> vector<32x128xf32>
    %c0_3 = arith.constant 0 : index
    %c0_4 = arith.constant 0 : index
    %3 = vector.load %arg3[%c0_3, %c0_4] : memref<1x128xf32, #tpu.memory_space<vmem>>, vector<1x128xf32>
    %4 = vector.broadcast %3 : vector<1x128xf32> to vector<32x128xf32>
    %5 = arith.addf %2, %4 : vector<32x128xf32>
    %cst_5 = arith.constant 0.000000e+00 : f32
    %6 = vector.broadcast %cst_5 : f32 to vector<32x128xf32>
    %7 = arith.maximumf %5, %6 : vector<32x128xf32>
    %c0_6 = arith.constant 0 : index
    %c0_7 = arith.constant 0 : index
    %8 = vector.load %arg4[%c0_6, %c0_7] : memref<128x128xf32, #tpu.memory_space<vmem>>, vector<128x128xf32>
    %cst_8 = arith.constant dense<0.000000e+00> : vector<32x128xf32>
    %9 = tpu.matmul %7, %8, %cst_8 {dimension_numbers = #tpu.dot_dimension_numbers<[1], [0], [0], [1], [0, 0, 1, 1], [], []>} : vector<32x128xf32>, vector<128x128xf32>, vector<32x128xf32> -> vector<32x128xf32>
    %c0_9 = arith.constant 0 : index
    %c0_10 = arith.constant 0 : index
    %10 = vector.load %arg5[%c0_9, %c0_10] : memref<1x128xf32, #tpu.memory_space<vmem>>, vector<1x128xf32>
    %11 = vector.broadcast %10 : vector<1x128xf32> to vector<32x128xf32>
    %12 = arith.addf %9, %11 : vector<32x128xf32>
    %13 = vector.extract_strided_slice %12 {offsets = [0, 0], sizes = [32, 4], strides = [1, 1]} : vector<32x128xf32> to vector<32x4xf32>
    %c0_11 = arith.constant 0 : index
    %c0_12 = arith.constant 0 : index
    %14 = vector.load %arg6[%c0_11, %c0_12] : memref<32x4xf32, #tpu.memory_space<vmem>>, vector<32x4xf32>
    tpu.vector_store %arg6[%c0_11, %c0_12], %13 {strides = array<i32>} : memref<32x4xf32, #tpu.memory_space<vmem>>, vector<32x4xf32>,
    return
  }
  func.func @transform_0(%arg0: i32) -> (i32, i32) {
    %c0_i32 = arith.constant 0 : i32
    %c0_i32_0 = arith.constant 0 : i32
    return %arg0, %c0_i32 : i32, i32
  }
  func.func @transform_1(%arg0: i32) -> (i32, i32) {
    %c0_i32 = arith.constant 0 : i32
    %c0_i32_0 = arith.constant 0 : i32
    %c0_i32_1 = arith.constant 0 : i32
    return %c0_i32, %c0_i32_0 : i32, i32
  }
  func.func @transform_2(%arg0: i32) -> (i32, i32) {
    %c0_i32 = arith.constant 0 : i32
    %c0_i32_0 = arith.constant 0 : i32
    %c0_i32_1 = arith.constant 0 : i32
    return %c0_i32, %c0_i32_0 : i32, i32
  }
  func.func @transform_3(%arg0: i32) -> (i32, i32) {
    %c0_i32 = arith.constant 0 : i32
    %c0_i32_0 = arith.constant 0 : i32
    %c0_i32_1 = arith.constant 0 : i32
    return %c0_i32, %c0_i32_0 : i32, i32
  }
  func.func @transform_4(%arg0: i32) -> (i32, i32) {
    %c0_i32 = arith.constant 0 : i32
    %c0_i32_0 = arith.constant 0 : i32
    %c0_i32_1 = arith.constant 0 : i32
    return %c0_i32, %c0_i32_0 : i32, i32
  }
  func.func @transform_5(%arg0: i32) -> (i32, i32) {
    %c0_i32 = arith.constant 0 : i32
    %c0_i32_0 = arith.constant 0 : i32
    return %arg0, %c0_i32 : i32, i32
  }
}

</mosaic_0001>

<llo_original>
// kernel: fully_connected_forward.1
$region0: #{fully_connected_forward.1}
  #allocation0 [shape = 'u32[]', space=smem, size = 0x4, offset = 0x4, fixed_abs, tag = 'smem constant byte address 0x4 - core index']
  #allocation1 [shape = 'u32[144,128]{1,0:T(1,128)}', space=vmem, size = 0x12000, scoped, tag = 'internal scratch']
  %s0 = inlined_call_operand.vmem [shape: f32[100,32], index: 0, kind: input, shape index: {}]
  %s1 = inlined_call_operand.hbm [shape: f32[32,128], index: 1, kind: input, shape index: {}]
  %s2 = inlined_call_operand.vmem [shape: f32[1,128], index: 2, kind: input, shape index: {}]
  %s3 = inlined_call_operand.vmem [shape: f32[128,128], index: 3, kind: input, shape index: {}]
  %s4 = inlined_call_operand.vmem [shape: f32[1,128], index: 4, kind: input, shape index: {}]
  %s5 = inlined_call_operand.vmem [shape: f32[100,4], index: 5, kind: output, shape index: {}]
  %s6 = sld [smem:[#allocation0]]
  $region105: #{fully_connected_forward.1} parent=0
    _
  %s8 = ssub.s32 1, %s6
  %s9 = scalar_select 0, %s8, %s6
  $region1: #{fully_connected_forward.1} parent=0
    #allocation2 [shape = 'u8[16384]{0}', space=vmem, size = 0x4000, scoped, tag = 'input window, operand 1, single buffered']
    #allocation3 [shape = 's32[2]{0}', space=sflag, size = 0x8, scoped, tag = 'scoped memory for fully_connected_forward.1']
    #allocation4 [shape = 'u8[32768]{0}', space=vmem, size = 0x8000, scoped, tag = 'output window, operand 0']
    %10 = vsyncpa [#allocation3], 0
    loop: start=0, step=1, limit=6
    $region2: #{fully_connected_forward.1} parent=1 // loop_pre_header
      _
    $region3: #{fully_connected_forward.1} parent=1 // loop_header
      %s12 = sphi 0, %s16
      %p13 = scmp.ge.s32.totalorder %s12, 6
      %s22 = sphi 0, %s24
      %s25 = sphi 0, %s22
      %s26 = sphi 0, %s25
      %s42 = sphi 0, %s26
      %s46 = sphi 0, %s46
      %s48 = sphi 0, %s46
      %s49 = sphi 0, %s48
      %s63 = sphi 0, %s49
      %s67 = sphi 0, %s67
      %s69 = sphi 0, %s67
      %s70 = sphi 0, %s69
      %s84 = sphi 0, %s70
      %s88 = sphi 0, %s88
      %s90 = sphi 0, %s88
      %s91 = sphi 0, %s90
      %s105 = sphi 0, %s91
      %s109 = sphi 0, %s109
      %s111 = sphi 0, %s109
      %s112 = sphi 0, %s111
      %s126 = sphi 0, %s112
      %s132 = sphi 0, %s134
      %s135 = sphi 0, %s132
      %s136 = sphi 0, %s135
      %s152 = sphi 0, %s136
    $region4: #{fully_connected_forward.1} parent=1 // loop_header_branch
      %15 = sbr.rel (%p13) target = $region8
    $region5: #{fully_connected_forward.1} parent=1 // loop_body
      %s17 = ssub.s32 %s12, 1
      %s18 = ssub.s32 %s12, 2
      %s19 = sadd.s32 %s12, 1
      %s20 = ssub.s32 %s12, %s19
      %p21 = scmp.eq.s32.totalorder %s20, 0
      %s23 = sadd.s32 %s22, 1
      %s24 = scalar_select %p21, %s22, %s23
      %p27 = pneg %p21
      %p28 = scmp.eq.s32.totalorder %s12, 3
      %p29 = por %p27, %p28
      %p30 = scmp.ne.s32.totalorder %s22, %s25
      %p31 = scmp.eq.s32.totalorder %s12, 0
      %p32 = por %p30, %p31
      %p33 = scmp.ne.s32.totalorder %s22, %s25
      %p34 = scmp.eq.s32.totalorder %s17, 3
      %p35 = por %p33, %p34
      %p36 = scmp.ne.s32.totalorder %s25, %s26
      %p37 = scmp.eq.s32.totalorder %s17, 0
      %p38 = por %p36, %p37
      %p39 = scmp.ne.s32.totalorder %s25, %s26
      %p40 = scmp.eq.s32.totalorder %s18, 3
      %p41 = por %p39, %p40
      %p43 = scmp.ne.s32.totalorder %s26, %s42
      %p44 = scmp.eq.s32.totalorder %s18, 0
      %p45 = por %p43, %p44
      %s47 = sadd.s32 %s46, 1
      %p50 = scmp.eq.s32.totalorder %s12, 3
      %p51 = scmp.ne.s32.totalorder %s46, %s48
      %p52 = scmp.eq.s32.totalorder %s12, 0
      %p53 = por %p51, %p52
      %p54 = scmp.ne.s32.totalorder %s46, %s48
      %p55 = scmp.eq.s32.totalorder %s17, 3
      %p56 = por %p54, %p55
      %p57 = scmp.ne.s32.totalorder %s48, %s49
      %p58 = scmp.eq.s32.totalorder %s17, 0
      %p59 = por %p57, %p58
      %p60 = scmp.ne.s32.totalorder %s48, %s49
      %p61 = scmp.eq.s32.totalorder %s18, 3
      %p62 = por %p60, %p61
      %p64 = scmp.ne.s32.totalorder %s49, %s63
      %p65 = scmp.eq.s32.totalorder %s18, 0
      %p66 = por %p64, %p65
      %s68 = sadd.s32 %s67, 1
      %p71 = scmp.eq.s32.totalorder %s12, 3
      %p72 = scmp.ne.s32.totalorder %s67, %s69
      %p73 = scmp.eq.s32.totalorder %s12, 0
      %p74 = por %p72, %p73
      %p75 = scmp.ne.s32.totalorder %s67, %s69
      %p76 = scmp.eq.s32.totalorder %s17, 3
      %p77 = por %p75, %p76
      %p78 = scmp.ne.s32.totalorder %s69, %s70
      %p79 = scmp.eq.s32.totalorder %s17, 0
      %p80 = por %p78, %p79
      %p81 = scmp.ne.s32.totalorder %s69, %s70
      %p82 = scmp.eq.s32.totalorder %s18, 3
      %p83 = por %p81, %p82
      %p85 = scmp.ne.s32.totalorder %s70, %s84
      %p86 = scmp.eq.s32.totalorder %s18, 0
      %p87 = por %p85, %p86
      %s89 = sadd.s32 %s88, 1
      %p92 = scmp.eq.s32.totalorder %s12, 3
      %p93 = scmp.ne.s32.totalorder %s88, %s90
      %p94 = scmp.eq.s32.totalorder %s12, 0
      %p95 = por %p93, %p94
      %p96 = scmp.ne.s32.totalorder %s88, %s90
      %p97 = scmp.eq.s32.totalorder %s17, 3
      %p98 = por %p96, %p97
      %p99 = scmp.ne.s32.totalorder %s90, %s91
      %p100 = scmp.eq.s32.totalorder %s17, 0
      %p101 = por %p99, %p100
      %p102 = scmp.ne.s32.totalorder %s90, %s91
      %p103 = scmp.eq.s32.totalorder %s18, 3
      %p104 = por %p102, %p103
      %p106 = scmp.ne.s32.totalorder %s91, %s105
      %p107 = scmp.eq.s32.totalorder %s18, 0
      %p108 = por %p106, %p107
      %s110 = sadd.s32 %s109, 1
      %p113 = scmp.eq.s32.totalorder %s12, 3
      %p114 = scmp.ne.s32.totalorder %s109, %s111
      %p115 = scmp.eq.s32.totalorder %s12, 0
      %p116 = por %p114, %p115
      %p117 = scmp.ne.s32.totalorder %s109, %s111
      %p118 = scmp.eq.s32.totalorder %s17, 3
      %p119 = por %p117, %p118
      %p120 = scmp.ne.s32.totalorder %s111, %s112
      %p121 = scmp.eq.s32.totalorder %s17, 0
      %p122 = por %p120, %p121
      %p123 = scmp.ne.s32.totalorder %s111, %s112
      %p124 = scmp.eq.s32.totalorder %s18, 3
      %p125 = por %p123, %p124
      %p127 = scmp.ne.s32.totalorder %s112, %s126
      %p128 = scmp.eq.s32.totalorder %s18, 0
      %p129 = por %p127, %p128
      %s130 = ssub.s32 %s12, %s19
      %p131 = scmp.eq.s32.totalorder %s130, 0
      %s133 = sadd.s32 %s132, 1
      %s134 = scalar_select %p131, %s132, %s133
      %p137 = pneg %p131
      %p138 = scmp.eq.s32.totalorder %s12, 3
      %p139 = por %p137, %p138
      %p140 = scmp.ne.s32.totalorder %s132, %s135
      %p141 = scmp.eq.s32.totalorder %s12, 0
      %p142 = por %p140, %p141
      %p143 = scmp.ne.s32.totalorder %s132, %s135
      %p144 = scmp.eq.s32.totalorder %s17, 3
      %p145 = por %p143, %p144
      %p146 = scmp.ne.s32.totalorder %s135, %s136
      %p147 = scmp.eq.s32.totalorder %s17, 0
      %p148 = por %p146, %p147
      %p149 = scmp.ne.s32.totalorder %s135, %s136
      %p150 = scmp.eq.s32.totalorder %s18, 3
      %p151 = por %p149, %p150
      %p153 = scmp.ne.s32.totalorder %s136, %s152
      %p154 = scmp.eq.s32.totalorder %s18, 0
      %p155 = por %p153, %p154
      %p156 = scmp.le.s32.totalorder 1, %s12
      %p157 = scmp.lt.s32.totalorder %s12, 5
      %p158 = pnand %p156, %p157
      %p159 = pneg %p158
      // Predicated region
      $region9: #{fully_connected_forward.1} parent=5 // pred_check
        _
      $region10: #{fully_connected_forward.1} parent=5 // pred_check_branch
        %161 = sbr.rel (%p158) target = $region12
      $region11: #{fully_connected_forward.1} parent=5 // pred_region
        %s162 = ssub.s32 %s12, 1
        // Predicated region
        $region13: #{fully_connected_forward.1} parent=11 // pred_check
          %p163 = pneg %p59
        $region14: #{fully_connected_forward.1} parent=11 // pred_check_branch
          %165 = sbr.rel (%p163) target = $region16
        $region15: #{fully_connected_forward.1} parent=11 // pred_region
          %s167 = ssub.s32 512, 512
          %168 = vsyncadd [#allocation3], %s167
          %s169 = sshll.u32 [#allocation2], 4
          %s170 = int_to_ptr.vmem [resolvable:$true] %s169
          %175 = dma.hbm_to_vmem [thread:$0]  %s1, 512, %s170, [#allocation3], 128, 128, 8
        $region16: #{fully_connected_forward.1} parent=11 // pred_fallthru
          _
        // Predicated region
        $region17: #{fully_connected_forward.1} parent=11 // pred_check
          %p176 = pneg %p80
        $region18: #{fully_connected_forward.1} parent=11 // pred_check_branch
          %178 = sbr.rel (%p176) target = $region20
        $region19: #{fully_connected_forward.1} parent=11 // pred_region
          _
        $region20: #{fully_connected_forward.1} parent=11 // pred_fallthru
          _
        // Predicated region
        $region21: #{fully_connected_forward.1} parent=11 // pred_check
          %p179 = pneg %p101
        $region22: #{fully_connected_forward.1} parent=11 // pred_check_branch
          %181 = sbr.rel (%p179) target = $region24
        $region23: #{fully_connected_forward.1} parent=11 // pred_region
          _
        $region24: #{fully_connected_forward.1} parent=11 // pred_fallthru
          _
        // Predicated region
        $region25: #{fully_connected_forward.1} parent=11 // pred_check
          %p182 = pneg %p122
        $region26: #{fully_connected_forward.1} parent=11 // pred_check_branch
          %184 = sbr.rel (%p182) target = $region28
        $region27: #{fully_connected_forward.1} parent=11 // pred_region
          _
        $region28: #{fully_connected_forward.1} parent=11 // pred_fallthru
          _
      $region12: #{fully_connected_forward.1} parent=5 // pred_fallthru
        _
      %p185 = scmp.lt.s32.totalorder %s12, 4
      // Predicated region
      $region29: #{fully_connected_forward.1} parent=5 // pred_check
        %p186 = pneg %p185
      $region30: #{fully_connected_forward.1} parent=5 // pred_check_branch
        %188 = sbr.rel (%p186) target = $region32
      $region31: #{fully_connected_forward.1} parent=5 // pred_region
        // Predicated region
        $region33: #{fully_connected_forward.1} parent=31 // pred_check
          %p189 = pneg %p32
        $region34: #{fully_connected_forward.1} parent=31 // pred_check_branch
          %191 = sbr.rel (%p189) target = $region36
        $region35: #{fully_connected_forward.1} parent=31 // pred_region
          %s192 = smul.u32 4, %s12
          %s193 = ssub.s32 13, %s192
          %p194 = scmp.lt.s32.totalorder %s193, 4
          %s195 = scalar_select %p194, %s193, 4
          %s196 = smul.u32 128, %s195
          %p197 = scmp.lt.s32.totalorder %s192, 12
          %s198 = scalar_select %p197, %s192, 12
          %s199 = smul.addr %s198, 8
          %s200 = scalar_lea.vmem %s0, %s199
          %s201 = smul.u32 4, %s12
          %s202 = ssub.s32 13, %s201
          %p203 = scmp.lt.s32.totalorder %s202, 4
          %s204 = scalar_select %p203, %s202, 4
          %s205 = smul.u32 128, %s204
        $region36: #{fully_connected_forward.1} parent=31 // pred_fallthru
          _
      $region32: #{fully_connected_forward.1} parent=5 // pred_fallthru
        _
      %p206 = scmp.le.s32.totalorder 1, %s12
      %p207 = scmp.lt.s32.totalorder %s12, 5
      %p208 = pnand %p206, %p207
      %p209 = pneg %p208
      // Predicated region
      $region37: #{fully_connected_forward.1} parent=5 // pred_check
        _
      $region38: #{fully_connected_forward.1} parent=5 // pred_check_branch
        %211 = sbr.rel (%p208) target = $region40
      $region39: #{fully_connected_forward.1} parent=5 // pred_region
        %s212 = ssub.s32 %s12, 1
        // Predicated region
        $region41: #{fully_connected_forward.1} parent=39 // pred_check
          %p213 = pneg %p59
        $region42: #{fully_connected_forward.1} parent=39 // pred_check_branch
          %215 = sbr.rel (%p213) target = $region44
        $region43: #{fully_connected_forward.1} parent=39 // pred_region
          %216 = dma.done [#allocation3], 512
        $region44: #{fully_connected_forward.1} parent=39 // pred_fallthru
          _
        %s217 = smul.u32 4, %s17
        %s218 = ssub.s32 13, %s217
        %p219 = scmp.lt.s32.totalorder %s218, 4
        %s220 = scalar_select %p219, %s218, 4
        %s221 = smul.u32 128, %s220
        %p222 = scmp.lt.s32.totalorder %s217, 12
        %s223 = scalar_select %p222, %s217, 12
        %s224 = smul.addr %s223, 8
        %s225 = scalar_lea.vmem %s0, %s224
        %p226 = pneg %p38
        %p227 = pneg %p35
        %p228 = pneg %p59
        %p229 = pneg %p56
        %p230 = pneg %p80
        %p231 = pneg %p77
        %p232 = pneg %p101
        %p233 = pneg %p98
        %p234 = pneg %p122
        %p235 = pneg %p119
        %p236 = pneg %p148
        %p237 = pneg %p145
        %s238 = sand.u32 %s135, 1
        %s239 = sand.u32 %s135, 1
        %s240 = smul.addr %s239, 32
        %s241 = scalar_lea.vmem [#allocation4], %s240
        %s242 = smul.u32 4, %s17
        %s243 = ssub.s32 13, %s242
        %p244 = scmp.lt.s32.totalorder %s243, 4
        %s245 = scalar_select %p244, %s243, 4
        %s246 = smul.u32 128, %s245
        %p247 = scmp.lt.s32.totalorder %s242, 12
        %s248 = scalar_select %p247, %s242, 12
        %s249 = smul.addr %s248, 8
        %s250 = scalar_lea.vmem %s0, %s249
        %s251 = smul.u32 4, %s17
        %s252 = ssub.s32 13, %s251
        %p253 = scmp.lt.s32.totalorder %s252, 4
        %s254 = scalar_select %p253, %s252, 4
        %s255 = smul.u32 128, %s254
        %s256 = smul.u32 4, %s17
        %s257 = ssub.s32 13, %s256
        %p258 = scmp.lt.s32.totalorder %s257, 4
        %s259 = scalar_select %p258, %s257, 4
        %s260 = smul.u32 128, %s259
        %v261 = vld [vmem:[%s250] sm:$0xff]
        %v262 = vld [vmem:[%s250 + $0x8] sm:$0xff]
        %v263 = vld [vmem:[%s250 + $0x10] sm:$0xff]
        %v264 = vld [vmem:[%s250 + $0x18] sm:$0xff]
        %v265 = vld [vmem:[#allocation2] sm:$0xff]
        %v266 = vld [vmem:[#allocation2 + $0x8] sm:$0xff]
        %v267 = vld [vmem:[#allocation2 + $0x10] sm:$0xff]
        %v268 = vld [vmem:[#allocation2 + $0x18] sm:$0xff]
        %v269 = vld [vmem:[%s2] sm:$0x1]
        %v271 = vlaneseq
        %v272 = vshrl.u32 %v271, 7
        %v273 = vsub.s32 0, %v272
        %v274 = vrot.slane %v269, %v273
        %vm276 = vcmask 261120
        %v278 = vsel %vm276, %v261, 0
        %v281 = vsel %vm276, %v262, 0
        %v284 = vsel %vm276, %v263, 0
        %v287 = vsel %vm276, %v264, 0
        %289 = vmatprep.subr.mxu0 0.0
        %290 = vmatpush1.msra.mxu0 0.0
        %291 = vmatprep.subr.mxu0 0.0
        %292 = vmatpush1.msra.mxu0 0.0
        %293 = vmatprep.subr.mxu0 0.0
        %294 = vmatpush1.msra.mxu0 0.0
        %295 = vmatprep.subr.mxu0 0.0
        %296 = vmatpush1.msra.mxu0 0.0
        %297 = vmatprep.subr.mxu0 0.0
        %298 = vmatpush1.msra.mxu0 0.0
        %299 = vmatprep.subr.mxu0 0.0
        %300 = vmatpush1.msra.mxu0 0.0
        %301 = vmatprep.subr.mxu0 0.0
        %302 = vmatpush1.msra.mxu0 0.0
        %303 = vmatprep.subr.mxu0 0.0
        %304 = vmatpush1.msra.mxu0 0.0
        %305 = vmatprep.subr.mxu0 0.0
        %306 = vmatpush1.msra.mxu0 0.0
        %307 = vmatprep.subr.mxu0 0.0
        %308 = vmatpush1.msra.mxu0 0.0
        %309 = vmatprep.subr.mxu0 0.0
        %310 = vmatpush1.msra.mxu0 0.0
        %311 = vmatprep.subr.mxu0 0.0
        %312 = vmatpush1.msra.mxu0 0.0
        %313 = vmatprep.subr.mxu0 0.0
        %314 = vmatpush1.msra.mxu0 %v268
        %315 = vmatprep.subr.mxu0 0.0
        %316 = vmatpush1.msra.mxu0 %v267
        %317 = vmatprep.subr.mxu0 0.0
        %318 = vmatpush1.msra.mxu0 %v266
        %319 = vmatprep.subr.mxu0 0.0
        %320 = vmatpush1.msra.mxu0 %v265
        %321 = vmatprep.subr.mxu0 0.0
        %322 = vmatpush2.msra.mxu0 0.0
        %323 = vmatprep.subr.mxu0 0.0
        %324 = vmatpush2.msra.mxu0 0.0
        %325 = vmatprep.subr.mxu0 0.0
        %326 = vmatpush2.msra.mxu0 0.0
        %327 = vmatprep.subr.mxu0 0.0
        %328 = vmatpush2.msra.mxu0 0.0
        %329 = vmatprep.subr.mxu0 0.0
        %330 = vmatpush2.msra.mxu0 0.0
        %331 = vmatprep.subr.mxu0 0.0
        %332 = vmatpush2.msra.mxu0 0.0
        %333 = vmatprep.subr.mxu0 0.0
        %334 = vmatpush2.msra.mxu0 0.0
        %335 = vmatprep.subr.mxu0 0.0
        %336 = vmatpush2.msra.mxu0 0.0
        %337 = vmatprep.subr.mxu0 0.0
        %338 = vmatpush2.msra.mxu0 0.0
        %339 = vmatprep.subr.mxu0 0.0
        %340 = vmatpush2.msra.mxu0 0.0
        %341 = vmatprep.subr.mxu0 0.0
        %342 = vmatpush2.msra.mxu0 0.0
        %343 = vmatprep.subr.mxu0 0.0
        %344 = vmatpush2.msra.mxu0 0.0
        %345 = vmatprep.subr.mxu0 0.0
        %346 = vmatpush2.msra.mxu0 0.0
        %347 = vmatprep.subr.mxu0 0.0
        %348 = vmatpush2.msra.mxu0 0.0
        %349 = vmatprep.subr.mxu0 0.0
        %350 = vmatpush2.msra.mxu0 0.0
        %351 = vmatprep.subr.mxu0 0.0
        %352 = vmatpush2.msra.mxu0 0.0
        %353 = vmatprep.mubr.f32.mxu0 0.0
        %354 = vmatmul.mubr.f32.gmra.mxu0 %v278
        %v355 = vpop.f32.mrf.mxu0
        %v356 = vadd.f32 %v274, %v355
        %v357 = vpop.f32.mrf.mxu0
        %358 = vmatprep.mubr.f32.mxu0 0.0
        %359 = vmatmul.mubr.f32.gmra.mxu0 %v281
        %v360 = vpop.f32.mrf.mxu0
        %v361 = vadd.f32 %v274, %v360
        %v362 = vpop.f32.mrf.mxu0
        %363 = vmatprep.mubr.f32.mxu0 0.0
        %364 = vmatmul.mubr.f32.gmra.mxu0 %v284
        %v365 = vpop.f32.mrf.mxu0
        %v366 = vadd.f32 %v274, %v365
        %v367 = vpop.f32.mrf.mxu0
        %368 = vmatprep.mubr.f32.mxu0 0.0
        %369 = vmatmul.mubr.f32.gmra.mxu0 %v287
        %v370 = vpop.f32.mrf.mxu0
        %v371 = vadd.f32 %v274, %v370
        %v372 = vpop.f32.mrf.mxu0
        %373 = vdwg.mxu0
        %v374 = vmax.f32 %v356, 0.0
        %v375 = vmax.f32 %v361, 0.0
        %v376 = vmax.f32 %v366, 0.0
        %v377 = vmax.f32 %v371, 0.0
        %v378 = vld [vmem:[%s3] sm:$0xff]
        %v379 = vld [vmem:[%s3 + $0x8] sm:$0xff]
        %v380 = vld [vmem:[%s3 + $0x10] sm:$0xff]
        %v381 = vld [vmem:[%s3 + $0x18] sm:$0xff]
        %v382 = vld [vmem:[%s3 + $0x20] sm:$0xff]
        %v383 = vld [vmem:[%s3 + $0x28] sm:$0xff]
        %v384 = vld [vmem:[%s3 + $0x30] sm:$0xff]
        %v385 = vld [vmem:[%s3 + $0x38] sm:$0xff]
        %v386 = vld [vmem:[%s3 + $0x40] sm:$0xff]
        %v387 = vld [vmem:[%s3 + $0x48] sm:$0xff]
        %v388 = vld [vmem:[%s3 + $0x50] sm:$0xff]
        %v389 = vld [vmem:[%s3 + $0x58] sm:$0xff]
        %v390 = vld [vmem:[%s3 + $0x60] sm:$0xff]
        %v391 = vld [vmem:[%s3 + $0x68] sm:$0xff]
        %v392 = vld [vmem:[%s3 + $0x70] sm:$0xff]
        %v393 = vld [vmem:[%s3 + $0x78] sm:$0xff]
        %v394 = vld [vmem:[%s4] sm:$0x1]
        %v396 = vlaneseq
        %v397 = vshrl.u32 %v396, 7
        %v398 = vsub.s32 0, %v397
        %v399 = vrot.slane %v394, %v398
        %401 = vmatprep.subr.mxu0 0.0
        %402 = vmatpush1.msra.mxu0 %v393
        %403 = vmatprep.subr.mxu0 0.0
        %404 = vmatpush1.msra.mxu0 %v392
        %405 = vmatprep.subr.mxu0 0.0
        %406 = vmatpush1.msra.mxu0 %v391
        %407 = vmatprep.subr.mxu0 0.0
        %408 = vmatpush1.msra.mxu0 %v390
        %409 = vmatprep.subr.mxu0 0.0
        %410 = vmatpush1.msra.mxu0 %v389
        %411 = vmatprep.subr.mxu0 0.0
        %412 = vmatpush1.msra.mxu0 %v388
        %413 = vmatprep.subr.mxu0 0.0
        %414 = vmatpush1.msra.mxu0 %v387
        %415 = vmatprep.subr.mxu0 0.0
        %416 = vmatpush1.msra.mxu0 %v386
        %417 = vmatprep.subr.mxu0 0.0
        %418 = vmatpush1.msra.mxu0 %v385
        %419 = vmatprep.subr.mxu0 0.0
        %420 = vmatpush1.msra.mxu0 %v384
        %421 = vmatprep.subr.mxu0 0.0
        %422 = vmatpush1.msra.mxu0 %v383
        %423 = vmatprep.subr.mxu0 0.0
        %424 = vmatpush1.msra.mxu0 %v382
        %425 = vmatprep.subr.mxu0 0.0
        %426 = vmatpush1.msra.mxu0 %v381
        %427 = vmatprep.subr.mxu0 0.0
        %428 = vmatpush1.msra.mxu0 %v380
        %429 = vmatprep.subr.mxu0 0.0
        %430 = vmatpush1.msra.mxu0 %v379
        %431 = vmatprep.subr.mxu0 0.0
        %432 = vmatpush1.msra.mxu0 %v378
        %433 = vmatprep.subr.mxu0 0.0
        %434 = vmatpush2.msra.mxu0 0.0
        %435 = vmatprep.subr.mxu0 0.0
        %436 = vmatpush2.msra.mxu0 0.0
        %437 = vmatprep.subr.mxu0 0.0
        %438 = vmatpush2.msra.mxu0 0.0
        %439 = vmatprep.subr.mxu0 0.0
        %440 = vmatpush2.msra.mxu0 0.0
        %441 = vmatprep.subr.mxu0 0.0
        %442 = vmatpush2.msra.mxu0 0.0
        %443 = vmatprep.subr.mxu0 0.0
        %444 = vmatpush2.msra.mxu0 0.0
        %445 = vmatprep.subr.mxu0 0.0
        %446 = vmatpush2.msra.mxu0 0.0
        %447 = vmatprep.subr.mxu0 0.0
        %448 = vmatpush2.msra.mxu0 0.0
        %449 = vmatprep.subr.mxu0 0.0
        %450 = vmatpush2.msra.mxu0 0.0
        %451 = vmatprep.subr.mxu0 0.0
        %452 = vmatpush2.msra.mxu0 0.0
        %453 = vmatprep.subr.mxu0 0.0
        %454 = vmatpush2.msra.mxu0 0.0
        %455 = vmatprep.subr.mxu0 0.0
        %456 = vmatpush2.msra.mxu0 0.0
        %457 = vmatprep.subr.mxu0 0.0
        %458 = vmatpush2.msra.mxu0 0.0
        %459 = vmatprep.subr.mxu0 0.0
        %460 = vmatpush2.msra.mxu0 0.0
        %461 = vmatprep.subr.mxu0 0.0
        %462 = vmatpush2.msra.mxu0 0.0
        %463 = vmatprep.subr.mxu0 0.0
        %464 = vmatpush2.msra.mxu0 0.0
        %465 = vmatprep.mubr.f32.mxu0 0.0
        %466 = vmatmul.mubr.f32.gmra.mxu0 %v374
        %v467 = vpop.f32.mrf.mxu0
        %v468 = vadd.f32 %v399, %v467
        %v469 = vpop.f32.mrf.mxu0
        %470 = vmatprep.mubr.f32.mxu0 0.0
        %471 = vmatmul.mubr.f32.gmra.mxu0 %v375
        %v472 = vpop.f32.mrf.mxu0
        %v473 = vadd.f32 %v399, %v472
        %v474 = vpop.f32.mrf.mxu0
        %475 = vmatprep.mubr.f32.mxu0 0.0
        %476 = vmatmul.mubr.f32.gmra.mxu0 %v376
        %v477 = vpop.f32.mrf.mxu0
        %v478 = vadd.f32 %v399, %v477
        %v479 = vpop.f32.mrf.mxu0
        %480 = vmatprep.mubr.f32.mxu0 0.0
        %481 = vmatmul.mubr.f32.gmra.mxu0 %v377
        %v482 = vpop.f32.mrf.mxu0
        %v483 = vadd.f32 %v399, %v482
        %v484 = vpop.f32.mrf.mxu0
        %485 = vdwg.mxu0
        %vm486 = vcmask 31744
        %487 = vst.msk [vmem:[%s241] sm:$0xff] %vm486, %v468
        %488 = vst.msk [vmem:[%s241 + $0x8] sm:$0xff] %vm486, %v473
        %489 = vst.msk [vmem:[%s241 + $0x10] sm:$0xff] %vm486, %v478
        %490 = vst.msk [vmem:[%s241 + $0x18] sm:$0xff] %vm486, %v483
        %s491 = sand.u32 %s135, 1
        %s492 = sand.u32 %s135, 1
        %s493 = smul.addr %s492, 32
        %s494 = scalar_lea.vmem [#allocation4], %s493
        // Predicated region
        $region45: #{fully_connected_forward.1} parent=39 // pred_check
          %p495 = pneg %p145
        $region46: #{fully_connected_forward.1} parent=39 // pred_check_branch
          %497 = sbr.rel (%p495) target = $region48
        $region47: #{fully_connected_forward.1} parent=39 // pred_region
          %s498 = smul.u32 4, %s17
          %s499 = ssub.s32 13, %s498
          %p500 = scmp.lt.s32.totalorder %s499, 4
          %s501 = scalar_select %p500, %s499, 4
          %s502 = smul.u32 128, %s501
          %p503 = scmp.ne.s32.totalorder 0, %s502
          %s504 = smul.addr %s498, 8
          %s505 = scalar_lea.vmem %s5, %s504
          // Predicated region
          $region49: #{fully_connected_forward.1} parent=47 // pred_check
            %p506 = pneg %p503
          $region50: #{fully_connected_forward.1} parent=47 // pred_check_branch
            %508 = sbr.rel (%p506) target = $region52
          $region51: #{fully_connected_forward.1} parent=47 // pred_region
            // Predicated region
            $region53: #{fully_connected_forward.1} parent=51 // pred_check
              _
            $region54: #{fully_connected_forward.1} parent=51 // pred_check_branch
              %510 = sbr.rel (0) target = $region56
            $region55: #{fully_connected_forward.1} parent=51 // pred_region
              // Predicated region
              $region75: #{fully_connected_forward.1} parent=55 // pred_check
                _
              $region76: #{fully_connected_forward.1} parent=55 // pred_check_branch
                %566 = sbr.rel (0) target = $region78
              $region77: #{fully_connected_forward.1} parent=55 // pred_region
                %s567 = sshrl.u32 %s501, 2
                // While loop
                $region79: #{fully_connected_forward.1} parent=77 // loop_pre_header
                  _
                $region80: #{fully_connected_forward.1} parent=77 // loop_header
                  %s569 = sphi 0, %s571
                  %p570 = scmp.ge.s32.totalorder %s569, %s567
                  %s574 = sphi 0, %s587
                  %s575 = sphi %s494, %s590
                  %s576 = sphi %s505, %s591
                $region81: #{fully_connected_forward.1} parent=77 // loop_header_branch
                  %573 = sbr.rel (%p570) target = $region85
                $region82: #{fully_connected_forward.1} parent=77 // loop_body
                  %v577 = vld [vmem:[%s575] sm:$0xff]
                  %578 = vst [vmem:[%s576] sm:$0xff] %v577
                  %v579 = vld [vmem:[%s575 + $0x8] sm:$0xff]
                  %580 = vst [vmem:[%s576 + $0x8] sm:$0xff] %v579
                  %v581 = vld [vmem:[%s575 + $0x10] sm:$0xff]
                  %582 = vst [vmem:[%s576 + $0x10] sm:$0xff] %v581
                  %v583 = vld [vmem:[%s575 + $0x18] sm:$0xff]
                  %584 = vst [vmem:[%s576 + $0x18] sm:$0xff] %v583
                  %s585 = sadd.s32 1, %s574
                  %p586 = scmp.ge.s32.totalorder %s585, %s567
                  %s587 = scalar_select %p586, 0, %s585
                  %s588 = smul.u32 %s587, 32
                  %s589 = smul.u32 %s587, 32
                  %s590 = scalar_lea.vmem %s494, %s588 [#allocation4]
                  %s591 = scalar_lea.vmem %s505, %s589
                $region83: #{fully_connected_forward.1} parent=77 // loop_footer
                  %s571 = sadd.s32 %s569, 1
                $region84: #{fully_connected_forward.1} parent=77 // loop_footer_branch
                  %568 = sbr.rel target = $region80
                $region85: #{fully_connected_forward.1} parent=77 // loop_exit
                  _
                %s592 = sshrl.u32 %s501, 2
                %s593 = sand.u32 %s501, 3
                %s594 = smul.u32 %s592, 4
                %s595 = smul.u32 8, %s594
                %s596 = scalar_lea.vmem %s494, %s595 [#allocation4]
                %s597 = smul.u32 8, %s594
                %s598 = scalar_lea.vmem %s505, %s597
                // While loop
                $region86: #{fully_connected_forward.1} parent=77 // loop_pre_header
                  _
                $region87: #{fully_connected_forward.1} parent=77 // loop_header
                  %s600 = sphi 0, %s602
                  %p601 = scmp.ge.s32.totalorder %s600, %s593
                  %s605 = sphi 0, %s612
                  %s606 = sphi %s596, %s615
                  %s607 = sphi %s598, %s616
                $region88: #{fully_connected_forward.1} parent=77 // loop_header_branch
                  %604 = sbr.rel (%p601) target = $region92
                $region89: #{fully_connected_forward.1} parent=77 // loop_body
                  %v608 = vld [vmem:[%s606] sm:$0xff]
                  %609 = vst [vmem:[%s607] sm:$0xff] %v608
                  %s610 = sadd.s32 1, %s605
                  %p611 = scmp.ge.s32.totalorder %s610, %s593
                  %s612 = scalar_select %p611, 0, %s610
                  %s613 = smul.u32 %s612, 8
                  %s614 = smul.u32 %s612, 8
                  %s615 = scalar_lea.vmem %s596, %s613 [#allocation4]
                  %s616 = scalar_lea.vmem %s598, %s614
                $region90: #{fully_connected_forward.1} parent=77 // loop_footer
                  %s602 = sadd.s32 %s600, 1
                $region91: #{fully_connected_forward.1} parent=77 // loop_footer_branch
                  %599 = sbr.rel target = $region87
                $region92: #{fully_connected_forward.1} parent=77 // loop_exit
                  _
              $region78: #{fully_connected_forward.1} parent=55 // pred_fallthru
                _
              // Predicated region
              $region93: #{fully_connected_forward.1} parent=55 // pred_check
                _
              $region94: #{fully_connected_forward.1} parent=55 // pred_check_branch
                %618 = sbr.rel target = $region96
              $region95: #{fully_connected_forward.1} parent=55 // pred_region
                _
              $region96: #{fully_connected_forward.1} parent=55 // pred_fallthru
                _
            $region56: #{fully_connected_forward.1} parent=51 // pred_fallthru
              _
            // Predicated region
            $region57: #{fully_connected_forward.1} parent=51 // pred_check
              _
            $region58: #{fully_connected_forward.1} parent=51 // pred_check_branch
              %512 = sbr.rel target = $region60
            $region59: #{fully_connected_forward.1} parent=51 // pred_region
              %s514 = ssub.s32 256, 1
              %s515 = sshrl.u32 %s501, 2
              // While loop
              $region61: #{fully_connected_forward.1} parent=59 // loop_pre_header
                _
              $region62: #{fully_connected_forward.1} parent=59 // loop_header
                %s517 = sphi 0, %s519
                %p518 = scmp.ge.s32.totalorder %s517, %s515
                %s522 = sphi 0, %s535
                %s523 = sphi %s494, %s538
                %s524 = sphi %s505, %s539
              $region63: #{fully_connected_forward.1} parent=59 // loop_header_branch
                %521 = sbr.rel (%p518) target = $region67
              $region64: #{fully_connected_forward.1} parent=59 // loop_body
                %v525 = vld [vmem:[%s523] sm:%s514]
                %526 = vst [vmem:[%s524] sm:%s514] %v525
                %v527 = vld [vmem:[%s523 + $0x8] sm:%s514]
                %528 = vst [vmem:[%s524 + $0x8] sm:%s514] %v527
                %v529 = vld [vmem:[%s523 + $0x10] sm:%s514]
                %530 = vst [vmem:[%s524 + $0x10] sm:%s514] %v529
                %v531 = vld [vmem:[%s523 + $0x18] sm:%s514]
                %532 = vst [vmem:[%s524 + $0x18] sm:%s514] %v531
                %s533 = sadd.s32 1, %s522
                %p534 = scmp.ge.s32.totalorder %s533, %s515
                %s535 = scalar_select %p534, 0, %s533
                %s536 = smul.u32 %s535, 32
                %s537 = smul.u32 %s535, 32
                %s538 = scalar_lea.vmem %s494, %s536 [#allocation4]
                %s539 = scalar_lea.vmem %s505, %s537
              $region65: #{fully_connected_forward.1} parent=59 // loop_footer
                %s519 = sadd.s32 %s517, 1
              $region66: #{fully_connected_forward.1} parent=59 // loop_footer_branch
                %516 = sbr.rel target = $region62
              $region67: #{fully_connected_forward.1} parent=59 // loop_exit
                _
              %s540 = sshrl.u32 %s501, 2
              %s541 = sand.u32 %s501, 3
              %s542 = smul.u32 %s540, 4
              %s543 = smul.u32 8, %s542
              %s544 = scalar_lea.vmem %s494, %s543 [#allocation4]
              %s545 = smul.u32 8, %s542
              %s546 = scalar_lea.vmem %s505, %s545
              // While loop
              $region68: #{fully_connected_forward.1} parent=59 // loop_pre_header
                _
              $region69: #{fully_connected_forward.1} parent=59 // loop_header
                %s548 = sphi 0, %s550
                %p549 = scmp.ge.s32.totalorder %s548, %s541
                %s553 = sphi 0, %s560
                %s554 = sphi %s544, %s563
                %s555 = sphi %s546, %s564
              $region70: #{fully_connected_forward.1} parent=59 // loop_header_branch
                %552 = sbr.rel (%p549) target = $region74
              $region71: #{fully_connected_forward.1} parent=59 // loop_body
                %v556 = vld [vmem:[%s554] sm:%s514]
                %557 = vst [vmem:[%s555] sm:%s514] %v556
                %s558 = sadd.s32 1, %s553
                %p559 = scmp.ge.s32.totalorder %s558, %s541
                %s560 = scalar_select %p559, 0, %s558
                %s561 = smul.u32 %s560, 8
                %s562 = smul.u32 %s560, 8
                %s563 = scalar_lea.vmem %s544, %s561 [#allocation4]
                %s564 = scalar_lea.vmem %s546, %s562
              $region72: #{fully_connected_forward.1} parent=59 // loop_footer
                %s550 = sadd.s32 %s548, 1
              $region73: #{fully_connected_forward.1} parent=59 // loop_footer_branch
                %547 = sbr.rel target = $region69
              $region74: #{fully_connected_forward.1} parent=59 // loop_exit
                _
            $region60: #{fully_connected_forward.1} parent=51 // pred_fallthru
              _
          $region52: #{fully_connected_forward.1} parent=47 // pred_fallthru
            _
          %619 = vnop
        $region48: #{fully_connected_forward.1} parent=39 // pred_fallthru
          _
      $region40: #{fully_connected_forward.1} parent=5 // pred_fallthru
        _
      %p620 = scmp.le.s32.totalorder 2, %s12
      // Predicated region
      $region97: #{fully_connected_forward.1} parent=5 // pred_check
        %p621 = pneg %p620
      $region98: #{fully_connected_forward.1} parent=5 // pred_check_branch
        %623 = sbr.rel (%p621) target = $region100
      $region99: #{fully_connected_forward.1} parent=5 // pred_region
        %s624 = ssub.s32 %s12, 2
        // Predicated region
        $region101: #{fully_connected_forward.1} parent=99 // pred_check
          %p625 = pneg %p151
        $region102: #{fully_connected_forward.1} parent=99 // pred_check_branch
          %627 = sbr.rel (%p625) target = $region104
        $region103: #{fully_connected_forward.1} parent=99 // pred_region
          %s628 = sand.u32 %s136, 1
          %s629 = sand.u32 %s136, 1
          %s630 = smul.addr %s629, 32
          %s631 = scalar_lea.vmem [#allocation4], %s630
        $region104: #{fully_connected_forward.1} parent=99 // pred_fallthru
          _
      $region100: #{fully_connected_forward.1} parent=5 // pred_fallthru
        _
    $region6: #{fully_connected_forward.1} parent=1 // loop_footer
      %s16 = sadd.s32 1, %s12
    $region7: #{fully_connected_forward.1} parent=1 // loop_footer_branch
      %11 = sbr.rel target = $region3
    $region8: #{fully_connected_forward.1} parent=1 // loop_exit
      _
    %632 = vsyncpa [#allocation3], 1
    %s633 = scalar_lea.sflag [#allocation3], 1
    %634 = vsyncpa %s633, 1

</llo_original>
